<compile_context>
chip_gen: v7x
topology: tpu7x:2x2x1
jax: 0.10.0
libtpu: 0.0.40
codegen_flags: <defaults>
</compile_context>

<pallas_src>
import math
import functools

import jax
import jax.numpy as jnp
from jax.experimental import pallas as pl
from jax.experimental.pallas import tpu as pltpu

R_FD = 2.0   # FermiDiracDecoder r
T_FD = 1.0   # FermiDiracDecoder t


# --------------------------------- kernel ------------------------------------
def _link_decode_kernel(c, emb_in_ref, emb_out_ref, xcat_ref,
                        w_cat_ref, b_sum_ref, w2_ref, scal_ref, probs_ref):
    """Fused decode for one tile of TE edges (edges on lanes).

    emb_in, emb_out : [D, TE]   hyperbolic embeddings (transposed)
    xcat            : [2D, TE]  [x_src^T ; x_dst^T] (Euclidean, transposed)
    w_cat           : [D, 2D]   [W_src | W_dst]   (torch Linear weights)
    b_sum           : [D, 1]    (b_src + b_dst)^T
    w2              : [8, D]    rows: [w_out ; w_e ; zeros...]
    scal (SMEM)     : [2]       [fc_out bias, w_h weight]
    probs           : [1, TE]   lane-dense output
    """
    sqrt_c = math.sqrt(c)

    x = emb_in_ref[...].astype(jnp.float32)       # [D, TE]
    y = emb_out_ref[...].astype(jnp.float32)      # [D, TE]

    # ---- hyperbolic squared distance (Poincare ball, curvature k=-c) --------
    # All per-edge scalars are [1, TE]  -> full lane occupancy.
    x2 = jnp.sum(x * x, axis=0, keepdims=True)
    y2 = jnp.sum(y * y, axis=0, keepdims=True)
    xy = jnp.sum(x * y, axis=0, keepdims=True)
    coef_u = 1.0 - 2.0 * c * xy + c * y2          # coeff of (-x)
    coef_y = 1.0 - c * x2                         # coeff of y
    denom = 1.0 - 2.0 * c * xy + (c * c) * x2 * y2 + 1e-15
    inv_denom = 1.0 / denom                       # single [1,TE] reciprocal
    ma = (coef_y * y - coef_u * x) * inv_denom    # mobius_add(-x, y)  [D, TE]
    ma_norm = jnp.sqrt(jnp.sum(ma * ma, axis=0, keepdims=True))
    z = jnp.clip(sqrt_c * ma_norm, 0.0, 1.0 - 1e-7)
    # dist = (2/sqrt(c)) * artanh(z);  sqdist = (1/c) * log((1+z)/(1-z))**2
    log_ratio = jnp.log((1.0 + z) / (1.0 - z))
    sqdist = (1.0 / c) * log_ratio * log_ratio    # [1, TE]

    # Fermi-Dirac written as a sigmoid (EUP, no overflow for large sqdist).
    probs_h = jax.nn.sigmoid((R_FD - sqdist) / T_FD)

    # ---- Euclidean branch: one fused MXU matmul ------------------------------
    # h_edge^T = relu([W_src|W_dst] @ [xs^T; xd^T] + (b_src+b_dst)^T)
    h_edge = jnp.maximum(
        jnp.dot(w_cat_ref[...], xcat_ref[...],
                preferred_element_type=jnp.float32) + b_sum_ref[...],
        0.0)                                      # [D, TE]

    # fc_out and w_e row-dots as one small matmul (rows 2..7 of w2 are zero).
    proj = jnp.dot(w2_ref[...], h_edge,
                   preferred_element_type=jnp.float32)   # [8, TE]

    b_out = scal_ref[0]
    w_h_w = scal_ref[1]

    probs_e = jax.nn.sigmoid(proj[0:1, :] + b_out)        # [1, TE]
    w_e = jax.nn.sigmoid(proj[1:2, :])                    # [1, TE]
    w_h = jax.nn.sigmoid(w_h_w * sqdist)                  # [1, TE]

    # L1 normalization (both sigmoids are positive -> |.| == identity).
    s = jnp.maximum(w_h + w_e, 1e-12)
    probs_ref[...] = ((w_h * probs_h + w_e * probs_e) / s).astype(probs_ref.dtype)


# --------------------------------- wrapper ------------------------------------
def _round_up(x, m):
    return (x + m - 1) // m * m


def link_decoder_forward(h0, h1, params, c, neg_samples=1, max_tile=512):
    """Mirrors LinkDecoder.forward: returns (pos_scores, neg_scores).

    pos and neg edge rows are decoded by a single pallas_call.
    """
    n_rows, D = h0.shape
    E = n_rows // (neg_samples + 2)

    # Assemble all rows (pos first, then neg).  fc_src is row-wise, so
    # tiling before fc_src is equivalent to the reference's fc-then-tile.
    # TODO(synk): express the neg-sample repetition via index_map (needs
    # E % TE == 0) to drop this jnp.tile HBM copy at production sizes.
    emb_in = jnp.tile(h0[:E], (neg_samples + 1, 1))   # [N, D]
    emb_out = h0[E:]                                  # [N, D]
    xs = jnp.tile(h1[:E], (neg_samples + 1, 1))       # [N, D]
    xd = h1[E:]                                       # [N, D]
    n_tot = emb_in.shape[0]

    # Edge-dimension tile (multiple of 128 lanes).
    TE = min(max_tile, _round_up(n_tot, 128))
    n_pad = _round_up(n_tot, TE)
    num_tiles = pl.cdiv(n_pad, TE)

    def prep(a):  # transpose to [D, N] (edges on lanes) and pad with zeros
        a_t = a.astype(jnp.float32).T
        return jnp.pad(a_t, ((0, 0), (0, n_pad - n_tot)))

    emb_in_t = prep(emb_in)                            # [D, n_pad]
    emb_out_t = prep(emb_out)                          # [D, n_pad]
    xcat_t = jnp.concatenate([prep(xs), prep(xd)], 0)  # [2D, n_pad]

    # Fused weights (host-side, one-time prep).
    w_cat = jnp.concatenate([params["w_src"], params["w_dst"]], axis=1)   # [D, 2D]
    b_sum = (params["b_src"] + params["b_dst"]).reshape(D, 1)             # [D, 1]
    w2 = jnp.concatenate(
        [params["w_out"], params["w_e"],
         jnp.zeros((6, D), jnp.float32)], axis=0)                          # [8, D]
    scalars = jnp.stack([params["b_out"], params["w_h"]]).astype(jnp.float32)

    kernel = functools.partial(_link_decode_kernel, float(c))

    probs = pl.pallas_call(
        kernel,
        out_shape=jax.ShapeDtypeStruct((1, n_pad), jnp.float32),
        grid=(num_tiles,),
        in_specs=[
            pl.BlockSpec((D, TE), lambda i: (0, i)),        # emb_in_t
            pl.BlockSpec((D, TE), lambda i: (0, i)),        # emb_out_t
            pl.BlockSpec((2 * D, TE), lambda i: (0, i)),    # xcat_t
            pl.BlockSpec((D, 2 * D), lambda i: (0, 0)),     # w_cat (resident)
            pl.BlockSpec((D, 1), lambda i: (0, 0)),         # b_sum (resident)
            pl.BlockSpec((8, D), lambda i: (0, 0)),         # w2    (resident)
            pl.BlockSpec(memory_space=pltpu.MemorySpace.SMEM),  # scalars
        ],
        out_specs=pl.BlockSpec((1, TE), lambda i: (0, i)),  # lane-dense store
        compiler_params=pltpu.CompilerParams(
            dimension_semantics=("parallel",)),
    )(emb_in_t, emb_out_t, xcat_t, w_cat, b_sum, w2, scalars)

    probs = probs.reshape(n_pad)[:n_tot]
    return probs[:E], probs[E:]


# ----------------------------- pure-JAX reference -----------------------------
def _decode_ref(emb_in, emb_out, xs, xd, p, c):
    sqrt_c = math.sqrt(c)
    x2 = jnp.sum(emb_in * emb_in, -1, keepdims=True)
    y2 = jnp.sum(emb_out * emb_out, -1, keepdims=True)
    xy = jnp.sum(emb_in * emb_out, -1, keepdims=True)
    coef_u = 1.0 - 2.0 * c * xy + c * y2
    coef_y = 1.0 - c * x2
    denom = 1.0 - 2.0 * c * xy + c * c * x2 * y2 + 1e-15
    ma = (coef_u * (-emb_in) + coef_y * emb_out) / denom
    z = jnp.clip(sqrt_c * jnp.linalg.norm(ma, axis=-1, keepdims=True),
                 0.0, 1.0 - 1e-7)
    dist = (2.0 / sqrt_c) * jnp.arctanh(z)
    sqdist = dist * dist
    probs_h = 1.0 / (jnp.exp((sqdist - R_FD) / T_FD) + 1.0)
    e_in = xs @ p["w_src"].T + p["b_src"]
    e_out = xd @ p["w_dst"].T + p["b_dst"]
    h_edge = jax.nn.relu(e_in + e_out)
    probs_e = jax.nn.sigmoid(h_edge @ p["w_out"].T + p["b_out"])
    w_e = jax.nn.sigmoid(h_edge @ p["w_e"].T)
    w_h = jax.nn.sigmoid(p["w_h"] * sqdist)
    s = jnp.maximum(w_h + w_e, 1e-12)
    return ((w_h * probs_h + w_e * probs_e) / s).reshape(-1)


def link_decoder_forward_ref(h0, h1, params, c, neg_samples=1):
    E = h0.shape[0] // (neg_samples + 2)
    pos = _decode_ref(h0[:E], h0[E:2 * E], h1[:E], h1[E:2 * E], params, c)
    neg = _decode_ref(jnp.tile(h0[:E], (neg_samples, 1)), h0[2 * E:],
                      jnp.tile(h1[:E], (neg_samples, 1)), h1[2 * E:], params, c)
    return pos, neg


# ----------------------------------- main -------------------------------------
def init_params(key, dim_out):
    """Deterministic synthetic init matching the nn.Linear shapes."""
    ks = jax.random.split(key, 8)
    bnd = 1.0 / math.sqrt(dim_out)
    return {
        "w_src": jax.random.uniform(ks[0], (dim_out, dim_out), jnp.float32, -bnd, bnd),
        "b_src": jax.random.uniform(ks[1], (1, dim_out), jnp.float32, -bnd, bnd),
        "w_dst": jax.random.uniform(ks[2], (dim_out, dim_out), jnp.float32, -bnd, bnd),
        "b_dst": jax.random.uniform(ks[3], (1, dim_out), jnp.float32, -bnd, bnd),
        "w_out": jax.random.uniform(ks[4], (1, dim_out), jnp.float32, -bnd, bnd),
        "b_out": jax.random.uniform(ks[5], (), jnp.float32, -bnd, bnd),
        "w_e": jax.random.uniform(ks[6], (1, dim_out), jnp.float32, -bnd, bnd),
        "w_h": jax.random.uniform(ks[7], (), jnp.float32, -1.0, 1.0),
    }


if __name__ == "__main__":
    key = jax.random.PRNGKey(0)
    k_h0, k_h1, k_p = jax.random.split(key, 3)

    dim_out = 32
    num_edge = 8
    neg_samples = 1
    c = 1.0
    n_rows = (neg_samples + 2) * num_edge  # 24

    # h[0]: hyperbolic embeddings -> keep well inside the Poincare ball
    h0 = 0.05 * jax.random.normal(k_h0, (n_rows, dim_out), jnp.float32)
    # h[1]: Euclidean embeddings
    h1 = jax.random.normal(k_h1, (n_rows, dim_out), jnp.float32)

    params = init_params(k_p, dim_out)

    pos, neg = link_decoder_forward(h0, h1, params, c, neg_samples)
    jax.block_until_ready((pos, neg))

    pos_ref, neg_ref = link_decoder_forward_ref(h0, h1, params, c, neg_samples)
    assert jnp.allclose(pos, pos_ref, rtol=1e-4, atol=1e-4)
    assert jnp.allclose(neg, neg_ref, rtol=1e-4, atol=1e-4)
    assert float(jnp.min(pos)) >= 0.0 and float(jnp.max(pos)) <= 1.0
    assert float(jnp.min(neg)) >= 0.0 and float(jnp.max(neg)) <= 1.0

    print("KERNEL_OK")
</pallas_src>

<mosaic_0001>
module attributes {stable_mosaic.version = 11 : i64} {
  func.func @_link_decode_kernel(%arg0: i32, %arg1: memref<32x128xf32, #tpu.memory_space<vmem>>, %arg2: memref<32x128xf32, #tpu.memory_space<vmem>>, %arg3: memref<64x128xf32, #tpu.memory_space<vmem>>, %arg4: memref<32x64xf32, #tpu.memory_space<vmem>>, %arg5: memref<32x1xf32, #tpu.memory_space<vmem>>, %arg6: memref<8x32xf32, #tpu.memory_space<vmem>>, %arg7: memref<2xf32, #tpu.memory_space<smem>>, %arg8: memref<1x128xf32, #tpu.memory_space<vmem>>) attributes {dimension_semantics = [#tpu.dimension_semantics<parallel>], iteration_bounds = array<i64: 1>, scalar_prefetch = 0 : i64, scratch_operands = 0 : i64, tpu.core_type = #tpu.core_type<tc>, window_params = [{transform_indices = @transform_0, window_bounds = array<i64: 32, 128>}, {transform_indices = @transform_1, window_bounds = array<i64: 32, 128>}, {transform_indices = @transform_2, window_bounds = array<i64: 64, 128>}, {pipeline_mode = #tpu.pipeline_mode<synchronous>, transform_indices = @transform_3, window_bounds = array<i64: 32, 64>}, {pipeline_mode = #tpu.pipeline_mode<synchronous>, transform_indices = @transform_4, window_bounds = array<i64: 32, 1>}, {pipeline_mode = #tpu.pipeline_mode<synchronous>, transform_indices = @transform_5, window_bounds = array<i64: 8, 32>}, {transform_indices = @transform_6, window_bounds = array<i64: 2>}, {transform_indices = @transform_7, window_bounds = array<i64: 1, 128>}]} {
    %c0 = arith.constant 0 : index
    %c0_0 = arith.constant 0 : index
    %0 = vector.load %arg1[%c0, %c0_0] : memref<32x128xf32, #tpu.memory_space<vmem>>, vector<32x128xf32>
    %c0_1 = arith.constant 0 : index
    %c0_2 = arith.constant 0 : index
    %1 = vector.load %arg2[%c0_1, %c0_2] : memref<32x128xf32, #tpu.memory_space<vmem>>, vector<32x128xf32>
    %2 = arith.mulf %0, %0 : vector<32x128xf32>
    %cst = arith.constant dense<0.000000e+00> : vector<128xf32>
    %3 = vector.multi_reduction <add>, %2, %cst [0] : vector<32x128xf32> to vector<128xf32>
    %4 = vector.shape_cast %3 : vector<128xf32> to vector<1x128xf32>
    %5 = arith.mulf %1, %1 : vector<32x128xf32>
    %cst_3 = arith.constant dense<0.000000e+00> : vector<128xf32>
    %6 = vector.multi_reduction <add>, %5, %cst_3 [0] : vector<32x128xf32> to vector<128xf32>
    %7 = vector.shape_cast %6 : vector<128xf32> to vector<1x128xf32>
    %8 = arith.mulf %0, %1 : vector<32x128xf32>
    %cst_4 = arith.constant dense<0.000000e+00> : vector<128xf32>
    %9 = vector.multi_reduction <add>, %8, %cst_4 [0] : vector<32x128xf32> to vector<128xf32>
    %10 = vector.shape_cast %9 : vector<128xf32> to vector<1x128xf32>
    %cst_5 = arith.constant 2.000000e+00 : f32
    %11 = vector.broadcast %cst_5 : f32 to vector<1x128xf32>
    %12 = arith.mulf %11, %10 : vector<1x128xf32>
    %cst_6 = arith.constant 1.000000e+00 : f32
    %13 = vector.broadcast %cst_6 : f32 to vector<1x128xf32>
    %14 = arith.subf %13, %12 : vector<1x128xf32>
    %cst_7 = arith.constant 1.000000e+00 : f32
    %15 = vector.broadcast %cst_7 : f32 to vector<1x128xf32>
    %16 = arith.mulf %15, %7 : vector<1x128xf32>
    %17 = arith.addf %14, %16 : vector<1x128xf32>
    %cst_8 = arith.constant 1.000000e+00 : f32
    %18 = vector.broadcast %cst_8 : f32 to vector<1x128xf32>
    %19 = arith.mulf %18, %4 : vector<1x128xf32>
    %cst_9 = arith.constant 1.000000e+00 : f32
    %20 = vector.broadcast %cst_9 : f32 to vector<1x128xf32>
    %21 = arith.subf %20, %19 : vector<1x128xf32>
    %cst_10 = arith.constant 2.000000e+00 : f32
    %22 = vector.broadcast %cst_10 : f32 to vector<1x128xf32>
    %23 = arith.mulf %22, %10 : vector<1x128xf32>
    %cst_11 = arith.constant 1.000000e+00 : f32
    %24 = vector.broadcast %cst_11 : f32 to vector<1x128xf32>
    %25 = arith.subf %24, %23 : vector<1x128xf32>
    %cst_12 = arith.constant 1.000000e+00 : f32
    %26 = vector.broadcast %cst_12 : f32 to vector<1x128xf32>
    %27 = arith.mulf %26, %4 : vector<1x128xf32>
    %28 = arith.mulf %27, %7 : vector<1x128xf32>
    %29 = arith.addf %25, %28 : vector<1x128xf32>
    %cst_13 = arith.constant 1.000000e-15 : f32
    %30 = vector.broadcast %cst_13 : f32 to vector<1x128xf32>
    %31 = arith.addf %29, %30 : vector<1x128xf32>
    %cst_14 = arith.constant 1.000000e+00 : f32
    %32 = vector.broadcast %cst_14 : f32 to vector<1x128xf32>
    %33 = arith.divf %32, %31 : vector<1x128xf32>
    %34 = vector.broadcast %21 : vector<1x128xf32> to vector<32x128xf32>
    %35 = arith.mulf %34, %1 : vector<32x128xf32>
    %36 = vector.broadcast %17 : vector<1x128xf32> to vector<32x128xf32>
    %37 = arith.mulf %36, %0 : vector<32x128xf32>
    %38 = arith.subf %35, %37 : vector<32x128xf32>
    %39 = vector.broadcast %33 : vector<1x128xf32> to vector<32x128xf32>
    %40 = arith.mulf %38, %39 : vector<32x128xf32>
    %41 = arith.mulf %40, %40 : vector<32x128xf32>
    %cst_15 = arith.constant dense<0.000000e+00> : vector<128xf32>
    %42 = vector.multi_reduction <add>, %41, %cst_15 [0] : vector<32x128xf32> to vector<128xf32>
    %43 = vector.shape_cast %42 : vector<128xf32> to vector<1x128xf32>
    %44 = math.sqrt %43 : vector<1x128xf32>
    %cst_16 = arith.constant 1.000000e+00 : f32
    %45 = vector.broadcast %cst_16 : f32 to vector<1x128xf32>
    %46 = arith.mulf %45, %44 : vector<1x128xf32>
    %cst_17 = arith.constant 0.000000e+00 : f32
    %cst_18 = arith.constant 0.99999988 : f32
    %47 = vector.broadcast %cst_17 : f32 to vector<1x128xf32>
    %48 = arith.maximumf %47, %46 : vector<1x128xf32>
    %49 = vector.broadcast %cst_18 : f32 to vector<1x128xf32>
    %50 = arith.minimumf %49, %48 : vector<1x128xf32>
    %cst_19 = arith.constant 1.000000e+00 : f32
    %51 = vector.broadcast %cst_19 : f32 to vector<1x128xf32>
    %52 = arith.addf %51, %50 : vector<1x128xf32>
    %cst_20 = arith.constant 1.000000e+00 : f32
    %53 = vector.broadcast %cst_20 : f32 to vector<1x128xf32>
    %54 = arith.subf %53, %50 : vector<1x128xf32>
    %55 = arith.divf %52, %54 : vector<1x128xf32>
    %56 = math.log %55 : vector<1x128xf32>
    %cst_21 = arith.constant 1.000000e+00 : f32
    %57 = vector.broadcast %cst_21 : f32 to vector<1x128xf32>
    %58 = arith.mulf %57, %56 : vector<1x128xf32>
    %59 = arith.mulf %58, %56 : vector<1x128xf32>
    %cst_22 = arith.constant 2.000000e+00 : f32
    %60 = vector.broadcast %cst_22 : f32 to vector<1x128xf32>
    %61 = arith.subf %60, %59 : vector<1x128xf32>
    %cst_23 = arith.constant 1.000000e+00 : f32
    %62 = vector.broadcast %cst_23 : f32 to vector<1x128xf32>
    %63 = arith.divf %61, %62 : vector<1x128xf32>
    %64 = arith.negf %63 : vector<1x128xf32>
    %65 = math.exp %64 : vector<1x128xf32>
    %cst_24 = arith.constant 1.000000e+00 : f32
    %66 = vector.broadcast %cst_24 : f32 to vector<1x128xf32>
    %67 = arith.addf %66, %65 : vector<1x128xf32>
    %68 = arith.divf %66, %67 : vector<1x128xf32>
    %c0_25 = arith.constant 0 : index
    %c0_26 = arith.constant 0 : index
    %69 = vector.load %arg4[%c0_25, %c0_26] : memref<32x64xf32, #tpu.memory_space<vmem>>, vector<32x64xf32>
    %c0_27 = arith.constant 0 : index
    %c0_28 = arith.constant 0 : index
    %70 = vector.load %arg3[%c0_27, %c0_28] : memref<64x128xf32, #tpu.memory_space<vmem>>, vector<64x128xf32>
    %cst_29 = arith.constant dense<0.000000e+00> : vector<32x128xf32>
    %71 = tpu.matmul %69, %70, %cst_29 {dimension_numbers = #tpu.dot_dimension_numbers<[1], [0], [0], [1], [0, 0, 1, 1], [], []>} : vector<32x64xf32>, vector<64x128xf32>, vector<32x128xf32> -> vector<32x128xf32>
    %c0_30 = arith.constant 0 : index
    %c0_31 = arith.constant 0 : index
    %72 = vector.load %arg5[%c0_30, %c0_31] : memref<32x1xf32, #tpu.memory_space<vmem>>, vector<32x1xf32>
    %73 = vector.broadcast %72 : vector<32x1xf32> to vector<32x128xf32>
    %74 = arith.addf %71, %73 : vector<32x128xf32>
    %cst_32 = arith.constant 0.000000e+00 : f32
    %75 = vector.broadcast %cst_32 : f32 to vector<32x128xf32>
    %76 = arith.maximumf %74, %75 : vector<32x128xf32>
    %c0_33 = arith.constant 0 : index
    %c0_34 = arith.constant 0 : index
    %77 = vector.load %arg6[%c0_33, %c0_34] : memref<8x32xf32, #tpu.memory_space<vmem>>, vector<8x32xf32>
    %cst_35 = arith.constant dense<0.000000e+00> : vector<8x128xf32>
    %78 = tpu.matmul %77, %76, %cst_35 {dimension_numbers = #tpu.dot_dimension_numbers<[1], [0], [0], [1], [0, 0, 1, 1], [], []>} : vector<8x32xf32>, vector<32x128xf32>, vector<8x128xf32> -> vector<8x128xf32>
    %c0_36 = arith.constant 0 : index
    %79 = memref.load %arg7[%c0_36] : memref<2xf32, #tpu.memory_space<smem>>
    %c1 = arith.constant 1 : index
    %80 = memref.load %arg7[%c1] : memref<2xf32, #tpu.memory_space<smem>>
    %81 = vector.extract_strided_slice %78 {offsets = [0, 0], sizes = [1, 128], strides = [1, 1]} : vector<8x128xf32> to vector<1x128xf32>
    %82 = vector.broadcast %79 : f32 to vector<1x128xf32>
    %83 = arith.addf %81, %82 : vector<1x128xf32>
    %84 = arith.negf %83 : vector<1x128xf32>
    %85 = math.exp %84 : vector<1x128xf32>
    %cst_37 = arith.constant 1.000000e+00 : f32
    %86 = vector.broadcast %cst_37 : f32 to vector<1x128xf32>
    %87 = arith.addf %86, %85 : vector<1x128xf32>
    %88 = arith.divf %86, %87 : vector<1x128xf32>
    %89 = vector.extract_strided_slice %78 {offsets = [1, 0], sizes = [1, 128], strides = [1, 1]} : vector<8x128xf32> to vector<1x128xf32>
    %90 = arith.negf %89 : vector<1x128xf32>
    %91 = math.exp %90 : vector<1x128xf32>
    %cst_38 = arith.constant 1.000000e+00 : f32
    %92 = vector.broadcast %cst_38 : f32 to vector<1x128xf32>
    %93 = arith.addf %92, %91 : vector<1x128xf32>
    %94 = arith.divf %92, %93 : vector<1x128xf32>
    %95 = vector.broadcast %80 : f32 to vector<1x128xf32>
    %96 = arith.mulf %95, %59 : vector<1x128xf32>
    %97 = arith.negf %96 : vector<1x128xf32>
    %98 = math.exp %97 : vector<1x128xf32>
    %cst_39 = arith.constant 1.000000e+00 : f32
    %99 = vector.broadcast %cst_39 : f32 to vector<1x128xf32>
    %100 = arith.addf %99, %98 : vector<1x128xf32>
    %101 = arith.divf %99, %100 : vector<1x128xf32>
    %102 = arith.addf %101, %94 : vector<1x128xf32>
    %cst_40 = arith.constant 9.99999996E-13 : f32
    %103 = vector.broadcast %cst_40 : f32 to vector<1x128xf32>
    %104 = arith.maximumf %102, %103 : vector<1x128xf32>
    %105 = arith.mulf %101, %68 : vector<1x128xf32>
    %106 = arith.mulf %94, %88 : vector<1x128xf32>
    %107 = arith.addf %105, %106 : vector<1x128xf32>
    %108 = arith.divf %107, %104 : vector<1x128xf32>
    %c0_41 = arith.constant 0 : index
    %c0_42 = arith.constant 0 : index
    %109 = vector.load %arg8[%c0_41, %c0_42] : memref<1x128xf32, #tpu.memory_space<vmem>>, vector<1x128xf32>
    tpu.vector_store %arg8[%c0_41, %c0_42], %108 {strides = array<i32>} : memref<1x128xf32, #tpu.memory_space<vmem>>, vector<1x128xf32>,
    return
  }
  func.func @transform_0(%arg0: i32) -> (i32, i32) {
    %c0_i32 = arith.constant 0 : i32
    %c0_i32_0 = arith.constant 0 : i32
    return %c0_i32, %arg0 : i32, i32
  }
  func.func @transform_1(%arg0: i32) -> (i32, i32) {
    %c0_i32 = arith.constant 0 : i32
    %c0_i32_0 = arith.constant 0 : i32
    return %c0_i32, %arg0 : i32, i32
  }
  func.func @transform_2(%arg0: i32) -> (i32, i32) {
    %c0_i32 = arith.constant 0 : i32
    %c0_i32_0 = arith.constant 0 : i32
    return %c0_i32, %arg0 : i32, i32
  }
  func.func @transform_3(%arg0: i32) -> (i32, i32) {
    %c0_i32 = arith.constant 0 : i32
    %c0_i32_0 = arith.constant 0 : i32
    %c0_i32_1 = arith.constant 0 : i32
    return %c0_i32, %c0_i32_0 : i32, i32
  }
  func.func @transform_4(%arg0: i32) -> (i32, i32) {
    %c0_i32 = arith.constant 0 : i32
    %c0_i32_0 = arith.constant 0 : i32
    %c0_i32_1 = arith.constant 0 : i32
    return %c0_i32, %c0_i32_0 : i32, i32
  }
  func.func @transform_5(%arg0: i32) -> (i32, i32) {
    %c0_i32 = arith.constant 0 : i32
    %c0_i32_0 = arith.constant 0 : i32
    %c0_i32_1 = arith.constant 0 : i32
    return %c0_i32, %c0_i32_0 : i32, i32
  }
  func.func @transform_6(%arg0: i32) -> i32 {
    %c0_i32 = arith.constant 0 : i32
    %c0_i32_0 = arith.constant 0 : i32
    return %c0_i32 : i32
  }
  func.func @transform_7(%arg0: i32) -> (i32, i32) {
    %c0_i32 = arith.constant 0 : i32
    %c0_i32_0 = arith.constant 0 : i32
    return %c0_i32, %arg0 : i32, i32
  }
}

</mosaic_0001>

<llo_original>
// kernel: tpu_custom_call.1
$region0: #{tpu_custom_call.1}
  #allocation0 [shape = 'u32[]', space=smem, size = 0x4, offset = 0x4, fixed_abs, tag = 'smem constant byte address 0x4 - core index']
  #allocation1 [shape = 'u32[144,128]{1,0:T(1,128)}', space=vmem, size = 0x12000, scoped, tag = 'internal scratch']
  %s0 = inlined_call_operand.vmem [shape: f32[32,128], index: 0, kind: input, shape index: {}]
  %s1 = inlined_call_operand.hbm [shape: f32[32,128], index: 1, kind: input, shape index: {}]
  %s2 = inlined_call_operand.hbm [shape: f32[64,128], index: 2, kind: input, shape index: {}]
  %s3 = inlined_call_operand.hbm [shape: f32[32,64], index: 3, kind: input, shape index: {}]
  %s4 = inlined_call_operand.vmem [shape: f32[32,1], index: 4, kind: input, shape index: {}]
  %s5 = inlined_call_operand.vmem [shape: f32[8,32], index: 5, kind: input, shape index: {}]
  %s6 = inlined_call_operand.vmem [shape: f32[2], index: 6, kind: input, shape index: {}]
  %s7 = inlined_call_operand.hbm [shape: f32[1,128], index: 7, kind: output, shape index: {}]
  %s8 = sld [smem:[#allocation0]]
  $region54: #{tpu_custom_call.1} parent=0
    _
  %s10 = ssub.s32 1, %s8
  %s11 = scalar_select 0, %s10, %s8
  $region1: #{tpu_custom_call.1} parent=0
    #allocation2 [shape = 'u8[16384]{0}', space=vmem, size = 0x4000, scoped, tag = 'input window, operand 1, single buffered']
    #allocation3 [shape = 's32[1]{0}', space=sflag, size = 0x4, scoped, tag = 'scoped memory for tpu_custom_call.1']
    #allocation4 [shape = 's32[1]{0}', space=sflag, size = 0x4, scoped, tag = 'scoped memory for tpu_custom_call.1']
    #allocation5 [shape = 's32[1]{0}', space=sflag, size = 0x4, scoped, tag = 'scoped memory for tpu_custom_call.1']
    #allocation6 [shape = 'u8[32768]{0}', space=vmem, size = 0x8000, scoped, tag = 'input window, operand 2, single buffered']
    #allocation7 [shape = 's32[1]{0}', space=sflag, size = 0x4, scoped, tag = 'scoped memory for tpu_custom_call.1']
    #allocation8 [shape = 'u8[16384]{0}', space=vmem, size = 0x4000, scoped, tag = 'input window, operand 3, single buffered']
    #allocation9 [shape = 'u8[512]{0}', space=smem, size = 0x200, scoped, tag = 'input window, operand 6, single buffered']
    #allocation10 [shape = 'u8[512]{0}', space=vmem, size = 0x400, scoped, tag = 'output window, operand 0, single buffered']
    %12 = vsyncpa [#allocation3], 0
    %13 = vsyncpa [#allocation7], 0
    %14 = vsyncpa [#allocation5], 0
    %15 = vsyncpa [#allocation4], 0
    // Predicated region
    $region2: #{tpu_custom_call.1} parent=1 // pred_check
      _
    $region3: #{tpu_custom_call.1} parent=1 // pred_check_branch
      %17 = sbr.rel (0) target = $region5
    $region4: #{tpu_custom_call.1} parent=1 // pred_region
      _
    $region5: #{tpu_custom_call.1} parent=1 // pred_fallthru
      _
    // Predicated region
    $region6: #{tpu_custom_call.1} parent=1 // pred_check
      _
    $region7: #{tpu_custom_call.1} parent=1 // pred_check_branch
      %19 = sbr.rel (0) target = $region9
    $region8: #{tpu_custom_call.1} parent=1 // pred_region
      %s21 = ssub.s32 512, 512
      %22 = vsyncadd [#allocation3], %s21
      %s23 = sshll.u32 [#allocation2], 4
      %s24 = int_to_ptr.vmem [resolvable:$true] %s23
      %29 = dma.hbm_to_vmem [thread:$0]  %s1, 512, %s24, [#allocation3], 128, 128, 8
    $region9: #{tpu_custom_call.1} parent=1 // pred_fallthru
      _
    // Predicated region
    $region10: #{tpu_custom_call.1} parent=1 // pred_check
      _
    $region11: #{tpu_custom_call.1} parent=1 // pred_check_branch
      %31 = sbr.rel (0) target = $region13
    $region12: #{tpu_custom_call.1} parent=1 // pred_region
      %s33 = ssub.s32 1024, 1024
      %34 = vsyncadd [#allocation7], %s33
      %s35 = sshll.u32 [#allocation6], 4
      %s36 = int_to_ptr.vmem [resolvable:$true] %s35
      %41 = dma.hbm_to_vmem [thread:$0]  %s2, 1024, %s36, [#allocation7], 128, 128, 8
    $region13: #{tpu_custom_call.1} parent=1 // pred_fallthru
      _
    // Predicated region
    $region14: #{tpu_custom_call.1} parent=1 // pred_check
      _
    $region15: #{tpu_custom_call.1} parent=1 // pred_check_branch
      %43 = sbr.rel (0) target = $region17
    $region16: #{tpu_custom_call.1} parent=1 // pred_region
      %s45 = ssub.s32 512, 512
      %46 = vsyncadd [#allocation7], %s45
      %s47 = sshll.u32 [#allocation8], 4
      %s48 = int_to_ptr.vmem [resolvable:$true] %s47
      %53 = dma.hbm_to_vmem [thread:$0]  %s3, 512, %s48, [#allocation7], 128, 128, 8
    $region17: #{tpu_custom_call.1} parent=1 // pred_fallthru
      _
    // Predicated region
    $region18: #{tpu_custom_call.1} parent=1 // pred_check
      _
    $region19: #{tpu_custom_call.1} parent=1 // pred_check_branch
      %55 = sbr.rel (0) target = $region21
    $region20: #{tpu_custom_call.1} parent=1 // pred_region
      _
    $region21: #{tpu_custom_call.1} parent=1 // pred_fallthru
      _
    // Predicated region
    $region22: #{tpu_custom_call.1} parent=1 // pred_check
      _
    $region23: #{tpu_custom_call.1} parent=1 // pred_check_branch
      %57 = sbr.rel (0) target = $region25
    $region24: #{tpu_custom_call.1} parent=1 // pred_region
      _
    $region25: #{tpu_custom_call.1} parent=1 // pred_fallthru
      _
    // Predicated region
    $region26: #{tpu_custom_call.1} parent=1 // pred_check
      _
    $region27: #{tpu_custom_call.1} parent=1 // pred_check_branch
      %59 = sbr.rel (0) target = $region29
    $region28: #{tpu_custom_call.1} parent=1 // pred_region
      %s61 = ssub.s32 16, 16
      %62 = vsyncadd [#allocation5], %s61
      %s64 = sshll.u32 %s6, 4
      %s65 = int_to_ptr.vmem [resolvable:$true] %s64
      %67 = dma.vmem_to_smem %s65, 16, [#allocation9], [#allocation5]
    $region29: #{tpu_custom_call.1} parent=1 // pred_fallthru
      _
    // Predicated region
    $region30: #{tpu_custom_call.1} parent=1 // pred_check
      _
    $region31: #{tpu_custom_call.1} parent=1 // pred_check_branch
      %69 = sbr.rel (0) target = $region33
    $region32: #{tpu_custom_call.1} parent=1 // pred_region
      %70 = dma.done [#allocation3], 512
    $region33: #{tpu_custom_call.1} parent=1 // pred_fallthru
      _
    // Predicated region
    $region34: #{tpu_custom_call.1} parent=1 // pred_check
      _
    $region35: #{tpu_custom_call.1} parent=1 // pred_check_branch
      %72 = sbr.rel (0) target = $region37
    $region36: #{tpu_custom_call.1} parent=1 // pred_region
      %73 = dma.done [#allocation7], 1024
    $region37: #{tpu_custom_call.1} parent=1 // pred_fallthru
      _
    // Predicated region
    $region38: #{tpu_custom_call.1} parent=1 // pred_check
      _
    $region39: #{tpu_custom_call.1} parent=1 // pred_check_branch
      %75 = sbr.rel (0) target = $region41
    $region40: #{tpu_custom_call.1} parent=1 // pred_region
      %76 = dma.done [#allocation7], 512
    $region41: #{tpu_custom_call.1} parent=1 // pred_fallthru
      _
    // Predicated region
    $region42: #{tpu_custom_call.1} parent=1 // pred_check
      _
    $region43: #{tpu_custom_call.1} parent=1 // pred_check_branch
      %78 = sbr.rel (0) target = $region45
    $region44: #{tpu_custom_call.1} parent=1 // pred_region
      %79 = dma.done [#allocation5], 16
    $region45: #{tpu_custom_call.1} parent=1 // pred_fallthru
      _
    %80 = sfence
    %v81 = vld [vmem:[%s0] sm:$0xff]
    %v82 = vld [vmem:[%s0 + $0x8] sm:$0xff]
    %v83 = vld [vmem:[%s0 + $0x10] sm:$0xff]
    %v84 = vld [vmem:[%s0 + $0x18] sm:$0xff]
    %v85 = vld [vmem:[#allocation2] sm:$0xff]
    %v86 = vld [vmem:[#allocation2 + $0x8] sm:$0xff]
    %v87 = vld [vmem:[#allocation2 + $0x10] sm:$0xff]
    %v88 = vld [vmem:[#allocation2 + $0x18] sm:$0xff]
    %v89 = vmul.f32 %v81, %v81
    %v90 = vmul.f32 %v82, %v82
    %v91 = vmul.f32 %v83, %v83
    %v92 = vmul.f32 %v84, %v84
    %v93 = vadd.f32 %v89, %v90
    %v94 = vadd.f32 %v93, %v91
    %v95 = vadd.f32 %v94, %v92
    %v96 = vrot.slane %v95, 4
    %v97 = vadd.f32 %v95, %v96
    %v98 = vrot.slane %v97, 2
    %v99 = vadd.f32 %v97, %v98
    %v100 = vrot.slane %v99, 1
    %v101 = vadd.f32 %v99, %v100
    %v102 = vmul.f32 %v85, %v85
    %v103 = vmul.f32 %v86, %v86
    %v104 = vmul.f32 %v87, %v87
    %v105 = vmul.f32 %v88, %v88
    %v106 = vadd.f32 %v102, %v103
    %v107 = vadd.f32 %v106, %v104
    %v108 = vadd.f32 %v107, %v105
    %v109 = vrot.slane %v108, 4
    %v110 = vadd.f32 %v108, %v109
    %v111 = vrot.slane %v110, 2
    %v112 = vadd.f32 %v110, %v111
    %v113 = vrot.slane %v112, 1
    %v114 = vadd.f32 %v112, %v113
    %v115 = vmul.f32 %v81, %v85
    %v116 = vmul.f32 %v82, %v86
    %v117 = vmul.f32 %v83, %v87
    %v118 = vmul.f32 %v84, %v88
    %v119 = vadd.f32 %v115, %v116
    %v120 = vadd.f32 %v119, %v117
    %v121 = vadd.f32 %v120, %v118
    %v122 = vrot.slane %v121, 4
    %v123 = vadd.f32 %v121, %v122
    %v124 = vrot.slane %v123, 2
    %v125 = vadd.f32 %v123, %v124
    %v126 = vrot.slane %v125, 1
    %v127 = vadd.f32 %v125, %v126
    %v128 = vmul.f32 %v127, 2.0
    %v129 = vsub.f32 1.0, %v128
    %v130 = vadd.f32 %v129, %v114
    %v131 = vsub.f32 1.0, %v101
    %v132 = vmul.f32 %v101, %v114
    %v133 = vadd.f32 %v129, %v132
    %v134 = vadd.f32 %v133, 1e-15
    %v135 = vrcp.pop %v134
    %v136 = vmul.f32 1.0, %v135
    %v137 = vmul.f32 %v131, %v85
    %v138 = vmul.f32 %v131, %v86
    %v139 = vmul.f32 %v131, %v87
    %v140 = vmul.f32 %v131, %v88
    %v141 = vmul.f32 %v130, %v81
    %v142 = vmul.f32 %v130, %v82
    %v143 = vmul.f32 %v130, %v83
    %v144 = vmul.f32 %v130, %v84
    %v145 = vsub.f32 %v137, %v141
    %v146 = vsub.f32 %v138, %v142
    %v147 = vsub.f32 %v139, %v143
    %v148 = vsub.f32 %v140, %v144
    %v149 = vmul.f32 %v145, %v136
    %v150 = vmul.f32 %v146, %v136
    %v151 = vmul.f32 %v147, %v136
    %v152 = vmul.f32 %v148, %v136
    %v153 = vmul.f32 %v149, %v149
    %v154 = vmul.f32 %v150, %v150
    %v155 = vmul.f32 %v151, %v151
    %v156 = vmul.f32 %v152, %v152
    %v157 = vadd.f32 %v153, %v154
    %v158 = vadd.f32 %v157, %v155
    %v159 = vadd.f32 %v158, %v156
    %v160 = vrot.slane %v159, 4
    %v161 = vadd.f32 %v159, %v160
    %v162 = vrot.slane %v161, 2
    %v163 = vadd.f32 %v161, %v162
    %v164 = vrot.slane %v163, 1
    %v165 = vadd.f32 %v163, %v164
    %v166 = vrsqrt.pop %v165
    %v167 = vmul.f32 %v165, %v166
    %vm168 = vcmp.eq.f32.partialorder %v165, inf
    %v169 = vsel %vm168, %v165, %v167
    %vm170 = vcmp.eq.f32.partialorder %v165, 0.0
    %v171 = vand.u32 %v165, 2147483648
    %v172 = vsel %vm170, %v171, %v169
    %v173 = vmax.f32 %v172, 0.0
    %v174 = vmin.f32 %v173, 0.9999999
    %v175 = vadd.f32 %v174, 1.0
    %v176 = vsub.f32 1.0, %v174
    %v177 = vrcp.pop %v176
    %v178 = vmul.f32 %v175, %v177
    %v179 = vlog2.pop %v178
    %v180 = vmul.f32 %v179, 0.6931472
    %v181 = vmul.f32 %v180, %v180
    %v182 = vsub.f32 2.0, %v181
    %v183 = vxor.u32 %v182, 2147483648
    %v184 = vmul.f32 %v183, 1.442695
    %v185 = vpow.pop %v184
    %v186 = vadd.f32 %v185, 1.0
    %v187 = vrcp.pop %v186
    %v188 = vmul.f32 1.0, %v187
    %v189 = vld [vmem:[#allocation8] sm:$0xff]
    %v190 = vld [vmem:[#allocation8 + $0x8] sm:$0xff]
    %v191 = vld [vmem:[#allocation8 + $0x10] sm:$0xff]
    %v192 = vld [vmem:[#allocation8 + $0x18] sm:$0xff]
    %v193 = vld [vmem:[#allocation6] sm:$0xff]
    %v194 = vld [vmem:[#allocation6 + $0x8] sm:$0xff]
    %v195 = vld [vmem:[#allocation6 + $0x10] sm:$0xff]
    %v196 = vld [vmem:[#allocation6 + $0x18] sm:$0xff]
    %v197 = vld [vmem:[#allocation6 + $0x20] sm:$0xff]
    %v198 = vld [vmem:[#allocation6 + $0x28] sm:$0xff]
    %v199 = vld [vmem:[#allocation6 + $0x30] sm:$0xff]
    %v200 = vld [vmem:[#allocation6 + $0x38] sm:$0xff]
    %v201 = vld [vmem:[%s4] sm:$0xff]
    %v202 = vld [vmem:[%s4 + $0x8] sm:$0xff]
    %v203 = vld [vmem:[%s4 + $0x10] sm:$0xff]
    %v204 = vld [vmem:[%s4 + $0x18] sm:$0xff]
    %206 = vset.pattern.permute.xlu0 0
    %207 = vperm.xlu0 %206, %v201
    %v208 = vpop.permute.xlu0 %207
    %211 = vset.pattern.permute.xlu0 0
    %212 = vperm.xlu0 %211, %v202
    %v213 = vpop.permute.xlu0 %212
    %216 = vset.pattern.permute.xlu0 0
    %217 = vperm.xlu0 %216, %v203
    %v218 = vpop.permute.xlu0 %217
    %221 = vset.pattern.permute.xlu0 0
    %222 = vperm.xlu0 %221, %v204
    %v223 = vpop.permute.xlu0 %222
    %vm225 = vcmask 523264
    %v227 = vsel %vm225, %v189, 0
    %v230 = vsel %vm225, %v190, 0
    %v233 = vsel %vm225, %v191, 0
    %v236 = vsel %vm225, %v192, 0
    %238 = vmatprep.subr.mxu0 0.0
    %239 = vmatpush1.msra.mxu0 %v193
    %240 = vmatprep.subr.mxu0 0.0
    %241 = vmatpush1.msra.mxu0 %v194
    %242 = vmatprep.subr.mxu0 0.0
    %243 = vmatpush1.msra.mxu0 %v195
    %244 = vmatprep.subr.mxu0 0.0
    %245 = vmatpush1.msra.mxu0 %v196
    %246 = vmatprep.subr.mxu0 0.0
    %247 = vmatpush1.msra.mxu0 %v197
    %248 = vmatprep.subr.mxu0 0.0
    %249 = vmatpush1.msra.mxu0 %v198
    %250 = vmatprep.subr.mxu0 0.0
    %251 = vmatpush1.msra.mxu0 %v199
    %252 = vmatprep.subr.mxu0 0.0
    %253 = vmatpush1.msra.mxu0 %v200
    %254 = vmatprep.subr.mxu0 0.0
    %255 = vmatpush1.msra.mxu0 0.0
    %256 = vmatprep.subr.mxu0 0.0
    %257 = vmatpush1.msra.mxu0 0.0
    %258 = vmatprep.subr.mxu0 0.0
    %259 = vmatpush1.msra.mxu0 0.0
    %260 = vmatprep.subr.mxu0 0.0
    %261 = vmatpush1.msra.mxu0 0.0
    %262 = vmatprep.subr.mxu0 0.0
    %263 = vmatpush1.msra.mxu0 0.0
    %264 = vmatprep.subr.mxu0 0.0
    %265 = vmatpush1.msra.mxu0 0.0
    %266 = vmatprep.subr.mxu0 0.0
    %267 = vmatpush1.msra.mxu0 0.0
    %268 = vmatprep.subr.mxu0 0.0
    %269 = vmatpush1.msra.mxu0 0.0
    %270 = vmatprep.subr.mxu0 0.0
    %271 = vmatpush1.msra.mxu0 0.0
    %272 = vmatprep.subr.mxu0 0.0
    %273 = vmatpush1.msra.mxu0 0.0
    %274 = vmatprep.subr.mxu0 0.0
    %275 = vmatpush1.msra.mxu0 0.0
    %276 = vmatprep.subr.mxu0 0.0
    %277 = vmatpush1.msra.mxu0 0.0
    %278 = vmatprep.subr.mxu0 0.0
    %279 = vmatpush1.msra.mxu0 0.0
    %280 = vmatprep.subr.mxu0 0.0
    %281 = vmatpush1.msra.mxu0 0.0
    %282 = vmatprep.subr.mxu0 0.0
    %283 = vmatpush1.msra.mxu0 0.0
    %284 = vmatprep.subr.mxu0 0.0
    %285 = vmatpush1.msra.mxu0 0.0
    %286 = vmatprep.subr.mxu0 0.0
    %287 = vmatpush1.msra.mxu0 0.0
    %288 = vmatprep.subr.mxu0 0.0
    %289 = vmatpush1.msra.mxu0 0.0
    %290 = vmatprep.subr.mxu0 0.0
    %291 = vmatpush1.msra.mxu0 0.0
    %292 = vmatprep.subr.mxu0 0.0
    %293 = vmatpush1.msra.mxu0 0.0
    %294 = vmatprep.subr.mxu0 0.0
    %295 = vmatpush1.msra.mxu0 0.0
    %296 = vmatprep.subr.mxu0 0.0
    %297 = vmatpush1.msra.mxu0 0.0
    %298 = vmatprep.subr.mxu0 0.0
    %299 = vmatpush1.msra.mxu0 0.0
    %300 = vmatprep.subr.mxu0 0.0
    %301 = vmatpush1.msra.mxu0 0.0
    %302 = vmatprep.mubr.f32.mxu0 0.0
    %303 = vmatmul.mubr.f32.gmra.mrb[0].mxu0 %v227
    %v304 = vpop.f32.mrb[0].mxu0
    %v305 = vadd.f32 %v208, %v304
    %v306 = vpop.f32.mrb[0].mxu0
    %307 = vmatprep.mubr.f32.mxu0 0.0
    %308 = vmatmul.mubr.f32.gmra.mrb[0].mxu0 %v230
    %v309 = vpop.f32.mrb[0].mxu0
    %v310 = vadd.f32 %v213, %v309
    %v311 = vpop.f32.mrb[0].mxu0
    %312 = vmatprep.mubr.f32.mxu0 0.0
    %313 = vmatmul.mubr.f32.gmra.mrb[0].mxu0 %v233
    %v314 = vpop.f32.mrb[0].mxu0
    %v315 = vadd.f32 %v218, %v314
    %v316 = vpop.f32.mrb[0].mxu0
    %317 = vmatprep.mubr.f32.mxu0 0.0
    %318 = vmatmul.mubr.f32.gmra.mrb[0].mxu0 %v236
    %v319 = vpop.f32.mrb[0].mxu0
    %v320 = vadd.f32 %v223, %v319
    %v321 = vpop.f32.mrb[0].mxu0
    %322 = vdwg.mxu0
    %v323 = vmax.f32 %v305, 0.0
    %v324 = vmax.f32 %v310, 0.0
    %v325 = vmax.f32 %v315, 0.0
    %v326 = vmax.f32 %v320, 0.0
    %v327 = vld [vmem:[%s5] sm:$0xff]
    %vm328 = vcmask 261120
    %v330 = vsel %vm328, %v327, 0
    %332 = vmatprep.subr.mxu0 0.0
    %333 = vmatpush1.msra.mxu0 %v323
    %334 = vmatprep.subr.mxu0 0.0
    %335 = vmatpush1.msra.mxu0 %v324
    %336 = vmatprep.subr.mxu0 0.0
    %337 = vmatpush1.msra.mxu0 %v325
    %338 = vmatprep.subr.mxu0 0.0
    %339 = vmatpush1.msra.mxu0 %v326
    %340 = vmatprep.subr.mxu0 0.0
    %341 = vmatpush1.msra.mxu0 0.0
    %342 = vmatprep.subr.mxu0 0.0
    %343 = vmatpush1.msra.mxu0 0.0
    %344 = vmatprep.subr.mxu0 0.0
    %345 = vmatpush1.msra.mxu0 0.0
    %346 = vmatprep.subr.mxu0 0.0
    %347 = vmatpush1.msra.mxu0 0.0
    %348 = vmatprep.subr.mxu0 0.0
    %349 = vmatpush1.msra.mxu0 0.0
    %350 = vmatprep.subr.mxu0 0.0
    %351 = vmatpush1.msra.mxu0 0.0
    %352 = vmatprep.subr.mxu0 0.0
    %353 = vmatpush1.msra.mxu0 0.0
    %354 = vmatprep.subr.mxu0 0.0
    %355 = vmatpush1.msra.mxu0 0.0
    %356 = vmatprep.subr.mxu0 0.0
    %357 = vmatpush1.msra.mxu0 0.0
    %358 = vmatprep.subr.mxu0 0.0
    %359 = vmatpush1.msra.mxu0 0.0
    %360 = vmatprep.subr.mxu0 0.0
    %361 = vmatpush1.msra.mxu0 0.0
    %362 = vmatprep.subr.mxu0 0.0
    %363 = vmatpush1.msra.mxu0 0.0
    %364 = vmatprep.subr.mxu0 0.0
    %365 = vmatpush1.msra.mxu0 0.0
    %366 = vmatprep.subr.mxu0 0.0
    %367 = vmatpush1.msra.mxu0 0.0
    %368 = vmatprep.subr.mxu0 0.0
    %369 = vmatpush1.msra.mxu0 0.0
    %370 = vmatprep.subr.mxu0 0.0
    %371 = vmatpush1.msra.mxu0 0.0
    %372 = vmatprep.subr.mxu0 0.0
    %373 = vmatpush1.msra.mxu0 0.0
    %374 = vmatprep.subr.mxu0 0.0
    %375 = vmatpush1.msra.mxu0 0.0
    %376 = vmatprep.subr.mxu0 0.0
    %377 = vmatpush1.msra.mxu0 0.0
    %378 = vmatprep.subr.mxu0 0.0
    %379 = vmatpush1.msra.mxu0 0.0
    %380 = vmatprep.subr.mxu0 0.0
    %381 = vmatpush1.msra.mxu0 0.0
    %382 = vmatprep.subr.mxu0 0.0
    %383 = vmatpush1.msra.mxu0 0.0
    %384 = vmatprep.subr.mxu0 0.0
    %385 = vmatpush1.msra.mxu0 0.0
    %386 = vmatprep.subr.mxu0 0.0
    %387 = vmatpush1.msra.mxu0 0.0
    %388 = vmatprep.subr.mxu0 0.0
    %389 = vmatpush1.msra.mxu0 0.0
    %390 = vmatprep.subr.mxu0 0.0
    %391 = vmatpush1.msra.mxu0 0.0
    %392 = vmatprep.subr.mxu0 0.0
    %393 = vmatpush1.msra.mxu0 0.0
    %394 = vmatprep.subr.mxu0 0.0
    %395 = vmatpush1.msra.mxu0 0.0
    %396 = vmatprep.mubr.f32.mxu0 0.0
    %397 = vmatmul.mubr.f32.gmra.mrb[0].mxu0 %v330
    %v398 = vpop.f32.mrb[0].mxu0
    %v399 = vadd.f32 0.0, %v398
    %v400 = vpop.f32.mrb[0].mxu0
    %401 = vdwg.mxu0
    %s402 = sld [smem:[#allocation9]]
    %s403 = sld [smem:[#allocation9 + $0x1]]
    %v404 = vstv %s402
    %v405 = vadd.f32 %v399, %v404
    %v406 = vxor.u32 %v405, 2147483648
    %v407 = vmul.f32 %v406, 1.442695
    %v408 = vpow.pop %v407
    %v409 = vadd.f32 %v408, 1.0
    %v410 = vrcp.pop %v409
    %v411 = vmul.f32 1.0, %v410
    %v412 = vxor.u32 %v399, 2147483648
    %v413 = vmul.f32 %v412, 1.442695
    %v414 = vpow.pop %v413
    %v415 = vadd.f32 %v414, 1.0
    %v416 = vrcp.pop %v415
    %v417 = vmul.f32 1.0, %v416
    %v418 = vstv %s403
    %v419 = vmul.f32 %v418, %v181
    %v420 = vxor.u32 %v419, 2147483648
    %v421 = vmul.f32 %v420, 1.442695
    %v422 = vpow.pop %v421
    %v423 = vadd.f32 %v422, 1.0
    %v424 = vrcp.pop %v423
    %v425 = vmul.f32 1.0, %v424
    %v426 = vadd.f32 %v425, %v417
    %v427 = vmax.f32 %v426, 1e-12
    %v428 = vmul.f32 %v425, %v188
    %v430 = vrot.slane %v411, 7
    %v432 = vmul.f32 %v417, %v430
    %v433 = vadd.f32 %v428, %v432
    %v434 = vrcp.pop %v427
    %v435 = vmul.f32 %v433, %v434
    %436 = vst [vmem:[#allocation10 - $0x1] sm:$0x2] %v435
    // Predicated region
    $region46: #{tpu_custom_call.1} parent=1 // pred_check
      _
    $region47: #{tpu_custom_call.1} parent=1 // pred_check_branch
      %438 = sbr.rel (0) target = $region49
    $region48: #{tpu_custom_call.1} parent=1 // pred_region
      %s440 = ssub.s32 16, 16
      %441 = vsyncadd [#allocation4], %s440
      %s443 = sshll.u32 [#allocation10], 4
      %s444 = int_to_ptr.vmem [resolvable:$true] %s443
      %446 = dma.vmem_to_hbm [thread:$0]  %s444, 16, %s7, [#allocation4]
    $region49: #{tpu_custom_call.1} parent=1 // pred_fallthru
      _
    // Predicated region
    $region50: #{tpu_custom_call.1} parent=1 // pred_check
      _
    $region51: #{tpu_custom_call.1} parent=1 // pred_check_branch
      %448 = sbr.rel (0) target = $region53
    $region52: #{tpu_custom_call.1} parent=1 // pred_region
      %449 = dma.done [#allocation4], 16
    $region53: #{tpu_custom_call.1} parent=1 // pred_fallthru
      _
    %450 = vsyncpa [#allocation3], 1
    %451 = vsyncpa [#allocation7], 1
    %452 = vsyncpa [#allocation4], 1
    %453 = vsyncpa [#allocation5], 1

</llo_original>
